<compile_context>
chip_gen: v7x
topology: tpu7x:2x2x1
jax: 0.10.0
libtpu: 0.0.40
codegen_flags: <defaults>
</compile_context>

<pallas_src>
import functools
import math

import jax
import jax.numpy as jnp
from jax.experimental import pallas as pl
from jax.experimental.pallas import tpu as pltpu


def _round_up(x, m):
    return (x + m - 1) // m * m


_INV_SQRT2 = 1.0 / math.sqrt(2.0)


# ------------------------------ fused kernel --------------------------------

def _adapter_kernel(hid_ref, vc_ref, wd_ref, bd_ref, wu_ref, bu_ref,
                    g_ref, b_ref, o_ref, *, eps):
    x = hid_ref[...]                                     # (tm, H), native dtype

    # down_proj (MXU, f32 accumulation) + exact erf GELU (= F.gelu default)
    h = jnp.dot(x, wd_ref[...], preferred_element_type=jnp.float32)
    h = h + bd_ref[...].astype(jnp.float32)              # (tm, H/4)
    h = 0.5 * h * (1.0 + jax.lax.erf(h * _INV_SQRT2))

    # + precomputed vision context for this batch (f32), broadcast over rows
    h = h + vc_ref[0]                                    # (1, H/4) -> (tm, H/4)

    # up_proj (cast back to weight dtype so bf16 weights use the bf16 MXU
    # path; a f32 model stays f32).  Dropout is identity at inference.
    h = jnp.dot(h.astype(wu_ref.dtype), wu_ref[...],
                preferred_element_type=jnp.float32)
    h = h + bu_ref[...].astype(jnp.float32)              # (tm, H)

    # residual + LayerNorm in f32, single-pass stats (biased variance,
    # matching torch.nn.LayerNorm)
    y = x.astype(jnp.float32) + h
    mean = jnp.mean(y, axis=-1, keepdims=True)
    mean_sq = jnp.mean(y * y, axis=-1, keepdims=True)
    var = mean_sq - mean * mean
    inv = jax.lax.rsqrt(var + eps)
    o_ref[...] = ((y - mean) * inv * g_ref[...].astype(jnp.float32)
                  + b_ref[...].astype(jnp.float32)).astype(o_ref.dtype)


# ------------------------------ wrapper (JAX) --------------------------------

def cross_modal_adapter(hidden_states, vision_features, params, *, eps,
                        tile_rows=512):
    """hidden_states: [B, S, H], vision_features: [B, Sv, H] -> [B, S, H]."""
    B, S, H = hidden_states.shape
    Bv, Sv, Hv = vision_features.shape
    assert Bv == B and Hv == H
    H4 = params["down_w"].shape[1]
    out_dtype = hidden_states.dtype

    # Hoisted vision-context branch: tiny [B, 1, H/4] computed in f32 outside
    # the kernel (removes the (Sv, H) slab + XLU reduce + M=1 matvec per tile).
    vc = (jnp.mean(vision_features.astype(jnp.float32), axis=1, keepdims=True)
          @ params["down_w"].astype(jnp.float32)
          + params["down_b"].astype(jnp.float32))         # (B, 1, H4), f32

    # Row tile (multiple of 8); pad S up to a whole number of tiles.  Pad rows
    # produce finite garbage that is sliced off after the call.
    tm = min(tile_rows, _round_up(S, 8))
    tm = _round_up(tm, 8)
    s_pad = _round_up(S, tm)
    n_s = s_pad // tm
    if s_pad != S:
        hidden_states = jnp.pad(hidden_states,
                                ((0, 0), (0, s_pad - S), (0, 0)))
    x2 = hidden_states.reshape(B * s_pad, H)

    # Explicit scoped-VMEM budget: double-buffered activation tiles +
    # resident constants + headroom, capped at v7x's 64 MiB physical VMEM.
    def nbytes(shape, dtype):
        return math.prod(shape) * jnp.dtype(dtype).itemsize

    const_bytes = (nbytes((H, H4), params["down_w"].dtype)
                   + nbytes((1, H4), params["down_b"].dtype)
                   + nbytes((H4, H), params["up_w"].dtype)
                   + nbytes((1, H), params["up_b"].dtype)
                   + 2 * nbytes((1, H), params["norm_g"].dtype)
                   + nbytes((1, 1, H4), jnp.float32))
    act_bytes = nbytes((tm, H), x2.dtype) + nbytes((tm, H), out_dtype)
    vmem_limit = int(min(64 * 2**20,
                         max(8 * 2**20, 2 * (2 * act_bytes + 2 * const_bytes))))

    out = pl.pallas_call(
        functools.partial(_adapter_kernel, eps=eps),
        out_shape=jax.ShapeDtypeStruct((B * s_pad, H), out_dtype),
        grid=(B, n_s),
        in_specs=[
            pl.BlockSpec((tm, H), lambda b, s: (b * n_s + s, 0)),   # hidden rows
            pl.BlockSpec((1, 1, H4), lambda b, s: (b, 0, 0)),       # vision ctx
            pl.BlockSpec((H, H4), lambda b, s: (0, 0)),             # weights stay
            pl.BlockSpec((1, H4), lambda b, s: (0, 0)),             # VMEM-resident
            pl.BlockSpec((H4, H), lambda b, s: (0, 0)),
            pl.BlockSpec((1, H), lambda b, s: (0, 0)),
            pl.BlockSpec((1, H), lambda b, s: (0, 0)),
            pl.BlockSpec((1, H), lambda b, s: (0, 0)),
        ],
        out_specs=pl.BlockSpec((tm, H), lambda b, s: (b * n_s + s, 0)),
        compiler_params=pltpu.CompilerParams(
            dimension_semantics=("parallel", "parallel"),
            vmem_limit_bytes=vmem_limit,
        ),
    )(
        x2,
        vc,
        params["down_w"], params["down_b"].reshape(1, H4),
        params["up_w"], params["up_b"].reshape(1, H),
        params["norm_g"].reshape(1, H), params["norm_b"].reshape(1, H),
    )
    return out.reshape(B, s_pad, H)[:, :S, :]


# --------------------------------- main --------------------------------------

if __name__ == "__main__":
    # Small shapes consistent with the module: hidden_size=32, seq=8 text
    # tokens, 16 vision tokens, batch=2.
    B, S, Sv, H = 2, 8, 16, 32
    H4 = H // 4
    eps = 1e-12                      # config.layer_norm_eps

    key = jax.random.PRNGKey(0)
    ks = jax.random.split(key, 6)
    params = dict(
        down_w=0.02 * jax.random.normal(ks[0], (H, H4), jnp.float32),   # torch weight.T
        down_b=0.02 * jax.random.normal(ks[1], (H4,), jnp.float32),
        up_w=0.02 * jax.random.normal(ks[2], (H4, H), jnp.float32),     # torch weight.T
        up_b=0.02 * jax.random.normal(ks[3], (H,), jnp.float32),
        norm_g=jnp.ones((H,), jnp.float32),
        norm_b=jnp.zeros((H,), jnp.float32),
    )
    hidden_states = jax.random.normal(ks[4], (B, S, H), dtype=jnp.float32)
    vision_features = jax.random.normal(ks[5], (B, Sv, H), dtype=jnp.float32)

    fwd = jax.jit(functools.partial(cross_modal_adapter, eps=eps))
    out = fwd(hidden_states, vision_features, params)
    jax.block_until_ready(out)

    # pure-JAX reference (dropout = identity at inference)
    def ref(hs, vf, p):
        h = hs @ p["down_w"] + p["down_b"]
        h = jax.nn.gelu(h, approximate=False)
        vc = vf.mean(axis=1, keepdims=True) @ p["down_w"] + p["down_b"]
        h = h + vc
        h = h @ p["up_w"] + p["up_b"]
        y = hs + h
        m = y.mean(-1, keepdims=True)
        v = ((y - m) ** 2).mean(-1, keepdims=True)
        return (y - m) * jax.lax.rsqrt(v + eps) * p["norm_g"] + p["norm_b"]

    expected = ref(hidden_states, vision_features, params)

    assert out.shape == (B, S, H), out.shape
    assert out.dtype == hidden_states.dtype, out.dtype
    assert bool(jnp.all(jnp.isfinite(out)))
    assert bool(jnp.allclose(out, expected, atol=1e-5, rtol=1e-5)), \
        float(jnp.max(jnp.abs(out - expected)))
    print("KERNEL_OK")
</pallas_src>

<mosaic_0001>
module attributes {stable_mosaic.version = 11 : i64} {
  func.func @_adapter_kernel(%arg0: i32, %arg1: i32, %arg2: memref<8x32xf32, #tpu.memory_space<vmem>>, %arg3: memref<1x1x8xf32, #tpu.memory_space<vmem>>, %arg4: memref<32x8xf32, #tpu.memory_space<vmem>>, %arg5: memref<1x8xf32, #tpu.memory_space<vmem>>, %arg6: memref<8x32xf32, #tpu.memory_space<vmem>>, %arg7: memref<1x32xf32, #tpu.memory_space<vmem>>, %arg8: memref<1x32xf32, #tpu.memory_space<vmem>>, %arg9: memref<1x32xf32, #tpu.memory_space<vmem>>, %arg10: memref<8x32xf32, #tpu.memory_space<vmem>>) attributes {dimension_semantics = [#tpu.dimension_semantics<parallel>, #tpu.dimension_semantics<parallel>], iteration_bounds = array<i64: 2, 1>, scalar_prefetch = 0 : i64, scratch_operands = 0 : i64, tpu.core_type = #tpu.core_type<tc>, window_params = [{transform_indices = @transform_0, window_bounds = array<i64: 8, 32>}, {transform_indices = @transform_1, window_bounds = array<i64: 1, 1, 8>}, {pipeline_mode = #tpu.pipeline_mode<synchronous>, transform_indices = @transform_2, window_bounds = array<i64: 32, 8>}, {pipeline_mode = #tpu.pipeline_mode<synchronous>, transform_indices = @transform_3, window_bounds = array<i64: 1, 8>}, {pipeline_mode = #tpu.pipeline_mode<synchronous>, transform_indices = @transform_4, window_bounds = array<i64: 8, 32>}, {pipeline_mode = #tpu.pipeline_mode<synchronous>, transform_indices = @transform_5, window_bounds = array<i64: 1, 32>}, {pipeline_mode = #tpu.pipeline_mode<synchronous>, transform_indices = @transform_6, window_bounds = array<i64: 1, 32>}, {pipeline_mode = #tpu.pipeline_mode<synchronous>, transform_indices = @transform_7, window_bounds = array<i64: 1, 32>}, {transform_indices = @transform_8, window_bounds = array<i64: 8, 32>}]} {
    %c0 = arith.constant 0 : index
    %c0_0 = arith.constant 0 : index
    %0 = vector.load %arg2[%c0, %c0_0] : memref<8x32xf32, #tpu.memory_space<vmem>>, vector<8x32xf32>
    %c0_1 = arith.constant 0 : index
    %c0_2 = arith.constant 0 : index
    %1 = vector.load %arg4[%c0_1, %c0_2] : memref<32x8xf32, #tpu.memory_space<vmem>>, vector<32x8xf32>
    %cst = arith.constant dense<0.000000e+00> : vector<8x8xf32>
    %2 = tpu.matmul %0, %1, %cst {dimension_numbers = #tpu.dot_dimension_numbers<[1], [0], [0], [1], [0, 0, 1, 1], [], []>} : vector<8x32xf32>, vector<32x8xf32>, vector<8x8xf32> -> vector<8x8xf32>
    %c0_3 = arith.constant 0 : index
    %c0_4 = arith.constant 0 : index
    %3 = vector.load %arg5[%c0_3, %c0_4] : memref<1x8xf32, #tpu.memory_space<vmem>>, vector<1x8xf32>
    %4 = vector.broadcast %3 : vector<1x8xf32> to vector<8x8xf32>
    %5 = arith.addf %2, %4 : vector<8x8xf32>
    %cst_5 = arith.constant 5.000000e-01 : f32
    %6 = vector.broadcast %cst_5 : f32 to vector<8x8xf32>
    %7 = arith.mulf %6, %5 : vector<8x8xf32>
    %cst_6 = arith.constant 0.707106769 : f32
    %8 = vector.broadcast %cst_6 : f32 to vector<8x8xf32>
    %9 = arith.mulf %5, %8 : vector<8x8xf32>
    %10 = math.erf %9 : vector<8x8xf32>
    %cst_7 = arith.constant 1.000000e+00 : f32
    %11 = vector.broadcast %cst_7 : f32 to vector<8x8xf32>
    %12 = arith.addf %11, %10 : vector<8x8xf32>
    %13 = arith.mulf %7, %12 : vector<8x8xf32>
    %c0_8 = arith.constant 0 : index
    %c0_9 = arith.constant 0 : index
    %c0_10 = arith.constant 0 : index
    %14 = vector.load %arg3[%c0_8, %c0_9, %c0_10] : memref<1x1x8xf32, #tpu.memory_space<vmem>>, vector<1x1x8xf32>
    %15 = vector.shape_cast %14 : vector<1x1x8xf32> to vector<1x8xf32>
    %16 = vector.broadcast %15 : vector<1x8xf32> to vector<8x8xf32>
    %17 = arith.addf %13, %16 : vector<8x8xf32>
    %c0_11 = arith.constant 0 : index
    %c0_12 = arith.constant 0 : index
    %18 = vector.load %arg6[%c0_11, %c0_12] : memref<8x32xf32, #tpu.memory_space<vmem>>, vector<8x32xf32>
    %cst_13 = arith.constant dense<0.000000e+00> : vector<8x32xf32>
    %19 = tpu.matmul %17, %18, %cst_13 {dimension_numbers = #tpu.dot_dimension_numbers<[1], [0], [0], [1], [0, 0, 1, 1], [], []>} : vector<8x8xf32>, vector<8x32xf32>, vector<8x32xf32> -> vector<8x32xf32>
    %c0_14 = arith.constant 0 : index
    %c0_15 = arith.constant 0 : index
    %20 = vector.load %arg7[%c0_14, %c0_15] : memref<1x32xf32, #tpu.memory_space<vmem>>, vector<1x32xf32>
    %21 = vector.broadcast %20 : vector<1x32xf32> to vector<8x32xf32>
    %22 = arith.addf %19, %21 : vector<8x32xf32>
    %23 = arith.addf %0, %22 : vector<8x32xf32>
    %cst_16 = arith.constant dense<0.000000e+00> : vector<8xf32>
    %24 = vector.multi_reduction <add>, %23, %cst_16 [1] : vector<8x32xf32> to vector<8xf32>
    %25 = vector.shape_cast %24 : vector<8xf32> to vector<8x1xf32>
    %cst_17 = arith.constant 3.200000e+01 : f32
    %26 = vector.broadcast %cst_17 : f32 to vector<8x1xf32>
    %27 = arith.divf %25, %26 : vector<8x1xf32>
    %28 = arith.mulf %23, %23 : vector<8x32xf32>
    %cst_18 = arith.constant dense<0.000000e+00> : vector<8xf32>
    %29 = vector.multi_reduction <add>, %28, %cst_18 [1] : vector<8x32xf32> to vector<8xf32>
    %30 = vector.shape_cast %29 : vector<8xf32> to vector<8x1xf32>
    %cst_19 = arith.constant 3.200000e+01 : f32
    %31 = vector.broadcast %cst_19 : f32 to vector<8x1xf32>
    %32 = arith.divf %30, %31 : vector<8x1xf32>
    %33 = arith.mulf %27, %27 : vector<8x1xf32>
    %34 = arith.subf %32, %33 : vector<8x1xf32>
    %cst_20 = arith.constant 9.99999996E-13 : f32
    %35 = vector.broadcast %cst_20 : f32 to vector<8x1xf32>
    %36 = arith.addf %34, %35 : vector<8x1xf32>
    %37 = math.rsqrt %36 : vector<8x1xf32>
    %38 = vector.broadcast %27 : vector<8x1xf32> to vector<8x32xf32>
    %39 = arith.subf %23, %38 : vector<8x32xf32>
    %40 = vector.broadcast %37 : vector<8x1xf32> to vector<8x32xf32>
    %41 = arith.mulf %39, %40 : vector<8x32xf32>
    %c0_21 = arith.constant 0 : index
    %c0_22 = arith.constant 0 : index
    %42 = vector.load %arg8[%c0_21, %c0_22] : memref<1x32xf32, #tpu.memory_space<vmem>>, vector<1x32xf32>
    %43 = vector.broadcast %42 : vector<1x32xf32> to vector<8x32xf32>
    %44 = arith.mulf %41, %43 : vector<8x32xf32>
    %c0_23 = arith.constant 0 : index
    %c0_24 = arith.constant 0 : index
    %45 = vector.load %arg9[%c0_23, %c0_24] : memref<1x32xf32, #tpu.memory_space<vmem>>, vector<1x32xf32>
    %46 = vector.broadcast %45 : vector<1x32xf32> to vector<8x32xf32>
    %47 = arith.addf %44, %46 : vector<8x32xf32>
    %c0_25 = arith.constant 0 : index
    %c0_26 = arith.constant 0 : index
    %48 = vector.load %arg10[%c0_25, %c0_26] : memref<8x32xf32, #tpu.memory_space<vmem>>, vector<8x32xf32>
    tpu.vector_store %arg10[%c0_25, %c0_26], %47 {strides = array<i32>} : memref<8x32xf32, #tpu.memory_space<vmem>>, vector<8x32xf32>,
    return
  }
  func.func @transform_0(%arg0: i32, %arg1: i32) -> (i32, i32) {
    %c1_i32 = arith.constant 1 : i32
    %0 = arith.muli %arg0, %c1_i32 : i32
    %1 = arith.addi %0, %arg1 : i32
    %c0_i32 = arith.constant 0 : i32
    %c0_i32_0 = arith.constant 0 : i32
    return %1, %c0_i32 : i32, i32
  }
  func.func @transform_1(%arg0: i32, %arg1: i32) -> (i32, i32, i32) {
    %c0_i32 = arith.constant 0 : i32
    %c0_i32_0 = arith.constant 0 : i32
    %c0_i32_1 = arith.constant 0 : i32
    return %arg0, %c0_i32, %c0_i32_0 : i32, i32, i32
  }
  func.func @transform_2(%arg0: i32, %arg1: i32) -> (i32, i32) {
    %c0_i32 = arith.constant 0 : i32
    %c0_i32_0 = arith.constant 0 : i32
    %c0_i32_1 = arith.constant 0 : i32
    return %c0_i32, %c0_i32_0 : i32, i32
  }
  func.func @transform_3(%arg0: i32, %arg1: i32) -> (i32, i32) {
    %c0_i32 = arith.constant 0 : i32
    %c0_i32_0 = arith.constant 0 : i32
    %c0_i32_1 = arith.constant 0 : i32
    return %c0_i32, %c0_i32_0 : i32, i32
  }
  func.func @transform_4(%arg0: i32, %arg1: i32) -> (i32, i32) {
    %c0_i32 = arith.constant 0 : i32
    %c0_i32_0 = arith.constant 0 : i32
    %c0_i32_1 = arith.constant 0 : i32
    return %c0_i32, %c0_i32_0 : i32, i32
  }
  func.func @transform_5(%arg0: i32, %arg1: i32) -> (i32, i32) {
    %c0_i32 = arith.constant 0 : i32
    %c0_i32_0 = arith.constant 0 : i32
    %c0_i32_1 = arith.constant 0 : i32
    return %c0_i32, %c0_i32_0 : i32, i32
  }
  func.func @transform_6(%arg0: i32, %arg1: i32) -> (i32, i32) {
    %c0_i32 = arith.constant 0 : i32
    %c0_i32_0 = arith.constant 0 : i32
    %c0_i32_1 = arith.constant 0 : i32
    return %c0_i32, %c0_i32_0 : i32, i32
  }
  func.func @transform_7(%arg0: i32, %arg1: i32) -> (i32, i32) {
    %c0_i32 = arith.constant 0 : i32
    %c0_i32_0 = arith.constant 0 : i32
    %c0_i32_1 = arith.constant 0 : i32
    return %c0_i32, %c0_i32_0 : i32, i32
  }
  func.func @transform_8(%arg0: i32, %arg1: i32) -> (i32, i32) {
    %c1_i32 = arith.constant 1 : i32
    %0 = arith.muli %arg0, %c1_i32 : i32
    %1 = arith.addi %0, %arg1 : i32
    %c0_i32 = arith.constant 0 : i32
    %c0_i32_0 = arith.constant 0 : i32
    return %1, %c0_i32 : i32, i32
  }
}

</mosaic_0001>

<llo_original>
// kernel: cross_modal_adapter.1
$region0: #{cross_modal_adapter.1}
  #allocation0 [shape = 'u32[]', space=smem, size = 0x4, offset = 0x4, fixed_abs, tag = 'smem constant byte address 0x4 - core index']
  #allocation1 [shape = 'u32[144,128]{1,0:T(1,128)}', space=vmem, size = 0x12000, scoped, tag = 'internal scratch']
  %s0 = inlined_call_operand.vmem [shape: f32[16,32], index: 0, kind: input, shape index: {}]
  %s1 = inlined_call_operand.vmem [shape: f32[2,1,8], index: 1, kind: input, shape index: {}]
  %s2 = inlined_call_operand.vmem [shape: f32[32,8], index: 2, kind: input, shape index: {}]
  %s3 = inlined_call_operand.vmem [shape: f32[1,8], index: 3, kind: input, shape index: {}]
  %s4 = inlined_call_operand.vmem [shape: f32[8,32], index: 4, kind: input, shape index: {}]
  %s5 = inlined_call_operand.vmem [shape: f32[1,32], index: 5, kind: input, shape index: {}]
  %s6 = inlined_call_operand.vmem [shape: f32[1,32], index: 6, kind: input, shape index: {}]
  %s7 = inlined_call_operand.vmem [shape: f32[1,32], index: 7, kind: input, shape index: {}]
  %s8 = inlined_call_operand.hbm [shape: f32[16,32], index: 8, kind: output, shape index: {}]
  %s9 = sld [smem:[#allocation0]]
  $region65: #{cross_modal_adapter.1} parent=0
    _
  %s11 = ssub.s32 1, %s9
  %s12 = scalar_select 0, %s11, %s9
  $region1: #{cross_modal_adapter.1} parent=0
    #allocation2 [shape = 'u8[8192]{0}', space=vmem, size = 0x2000, scoped, tag = 'output window, operand 0']
    #allocation3 [shape = 's32[2]{0}', space=sflag, size = 0x8, scoped, tag = 'scoped memory for cross_modal_adapter.1']
    %13 = vsyncpa [#allocation3], 0
    %s14 = scalar_lea.sflag [#allocation3], 1
    %15 = vsyncpa %s14, 0
    loop: start=0, step=1, limit=4
    $region2: #{cross_modal_adapter.1} parent=1 // loop_pre_header
      _
    $region3: #{cross_modal_adapter.1} parent=1 // loop_header
      %s17 = sphi 0, %s21
      %p18 = scmp.ge.s32.totalorder %s17, 4
      %s24 = sphi 0, %s36
      %s25 = sphi 0, %s32
      %s26 = sphi 0, %s24
      %s27 = sphi 0, %s25
      %s28 = sphi 0, %s26
      %s29 = sphi 0, %s27
      %s41 = sphi 0, %s43
      %s44 = sphi 0, %s41
      %s45 = sphi 0, %s44
      %s61 = sphi 0, %s45
      %s67 = sphi 0, %s69
      %s70 = sphi 0, %s67
      %s71 = sphi 0, %s70
      %s87 = sphi 0, %s71
      %s91 = sphi 0, %s91
      %s93 = sphi 0, %s91
      %s94 = sphi 0, %s93
      %s108 = sphi 0, %s94
      %s112 = sphi 0, %s112
      %s114 = sphi 0, %s112
      %s115 = sphi 0, %s114
      %s129 = sphi 0, %s115
      %s133 = sphi 0, %s133
      %s135 = sphi 0, %s133
      %s136 = sphi 0, %s135
      %s150 = sphi 0, %s136
      %s154 = sphi 0, %s154
      %s156 = sphi 0, %s154
      %s157 = sphi 0, %s156
      %s171 = sphi 0, %s157
      %s175 = sphi 0, %s175
      %s177 = sphi 0, %s175
      %s178 = sphi 0, %s177
      %s192 = sphi 0, %s178
      %s196 = sphi 0, %s196
      %s198 = sphi 0, %s196
      %s199 = sphi 0, %s198
      %s213 = sphi 0, %s199
      %s221 = sphi 0, %s223
      %s224 = sphi 0, %s221
      %s225 = sphi 0, %s224
      %s241 = sphi 0, %s225
    $region4: #{cross_modal_adapter.1} parent=1 // loop_header_branch
      %20 = sbr.rel (%p18) target = $region8
    $region5: #{cross_modal_adapter.1} parent=1 // loop_body
      %s22 = ssub.s32 %s17, 1
      %s23 = ssub.s32 %s17, 2
      %s30 = sadd.s32 1, %s25
      %p31 = scmp.ge.s32.totalorder %s30, 1
      %s32 = scalar_select %p31, 0, %s30
      %s33 = sadd.s32 1, %s24
      %s34 = scalar_select %p31, %s33, %s24
      %p35 = scmp.ge.s32.totalorder %s34, 2
      %s36 = scalar_select %p35, 0, %s34
      %s37 = sadd.s32 %s24, %s25
      %s38 = sadd.s32 %s36, %s32
      %s39 = ssub.s32 %s37, %s38
      %p40 = scmp.eq.s32.totalorder %s39, 0
      %s42 = sadd.s32 %s41, 1
      %s43 = scalar_select %p40, %s41, %s42
      %p46 = pneg %p40
      %p47 = scmp.eq.s32.totalorder %s17, 1
      %p48 = por %p46, %p47
      %p49 = scmp.ne.s32.totalorder %s41, %s44
      %p50 = scmp.eq.s32.totalorder %s17, 0
      %p51 = por %p49, %p50
      %p52 = scmp.ne.s32.totalorder %s41, %s44
      %p53 = scmp.eq.s32.totalorder %s22, 1
      %p54 = por %p52, %p53
      %p55 = scmp.ne.s32.totalorder %s44, %s45
      %p56 = scmp.eq.s32.totalorder %s22, 0
      %p57 = por %p55, %p56
      %p58 = scmp.ne.s32.totalorder %s44, %s45
      %p59 = scmp.eq.s32.totalorder %s23, 1
      %p60 = por %p58, %p59
      %p62 = scmp.ne.s32.totalorder %s45, %s61
      %p63 = scmp.eq.s32.totalorder %s23, 0
      %p64 = por %p62, %p63
      %s65 = ssub.s32 %s24, %s36
      %p66 = scmp.eq.s32.totalorder %s65, 0
      %s68 = sadd.s32 %s67, 1
      %s69 = scalar_select %p66, %s67, %s68
      %p72 = pneg %p66
      %p73 = scmp.eq.s32.totalorder %s17, 1
      %p74 = por %p72, %p73
      %p75 = scmp.ne.s32.totalorder %s67, %s70
      %p76 = scmp.eq.s32.totalorder %s17, 0
      %p77 = por %p75, %p76
      %p78 = scmp.ne.s32.totalorder %s67, %s70
      %p79 = scmp.eq.s32.totalorder %s22, 1
      %p80 = por %p78, %p79
      %p81 = scmp.ne.s32.totalorder %s70, %s71
      %p82 = scmp.eq.s32.totalorder %s22, 0
      %p83 = por %p81, %p82
      %p84 = scmp.ne.s32.totalorder %s70, %s71
      %p85 = scmp.eq.s32.totalorder %s23, 1
      %p86 = por %p84, %p85
      %p88 = scmp.ne.s32.totalorder %s71, %s87
      %p89 = scmp.eq.s32.totalorder %s23, 0
      %p90 = por %p88, %p89
      %s92 = sadd.s32 %s91, 1
      %p95 = scmp.eq.s32.totalorder %s17, 1
      %p96 = scmp.ne.s32.totalorder %s91, %s93
      %p97 = scmp.eq.s32.totalorder %s17, 0
      %p98 = por %p96, %p97
      %p99 = scmp.ne.s32.totalorder %s91, %s93
      %p100 = scmp.eq.s32.totalorder %s22, 1
      %p101 = por %p99, %p100
      %p102 = scmp.ne.s32.totalorder %s93, %s94
      %p103 = scmp.eq.s32.totalorder %s22, 0
      %p104 = por %p102, %p103
      %p105 = scmp.ne.s32.totalorder %s93, %s94
      %p106 = scmp.eq.s32.totalorder %s23, 1
      %p107 = por %p105, %p106
      %p109 = scmp.ne.s32.totalorder %s94, %s108
      %p110 = scmp.eq.s32.totalorder %s23, 0
      %p111 = por %p109, %p110
      %s113 = sadd.s32 %s112, 1
      %p116 = scmp.eq.s32.totalorder %s17, 1
      %p117 = scmp.ne.s32.totalorder %s112, %s114
      %p118 = scmp.eq.s32.totalorder %s17, 0
      %p119 = por %p117, %p118
      %p120 = scmp.ne.s32.totalorder %s112, %s114
      %p121 = scmp.eq.s32.totalorder %s22, 1
      %p122 = por %p120, %p121
      %p123 = scmp.ne.s32.totalorder %s114, %s115
      %p124 = scmp.eq.s32.totalorder %s22, 0
      %p125 = por %p123, %p124
      %p126 = scmp.ne.s32.totalorder %s114, %s115
      %p127 = scmp.eq.s32.totalorder %s23, 1
      %p128 = por %p126, %p127
      %p130 = scmp.ne.s32.totalorder %s115, %s129
      %p131 = scmp.eq.s32.totalorder %s23, 0
      %p132 = por %p130, %p131
      %s134 = sadd.s32 %s133, 1
      %p137 = scmp.eq.s32.totalorder %s17, 1
      %p138 = scmp.ne.s32.totalorder %s133, %s135
      %p139 = scmp.eq.s32.totalorder %s17, 0
      %p140 = por %p138, %p139
      %p141 = scmp.ne.s32.totalorder %s133, %s135
      %p142 = scmp.eq.s32.totalorder %s22, 1
      %p143 = por %p141, %p142
      %p144 = scmp.ne.s32.totalorder %s135, %s136
      %p145 = scmp.eq.s32.totalorder %s22, 0
      %p146 = por %p144, %p145
      %p147 = scmp.ne.s32.totalorder %s135, %s136
      %p148 = scmp.eq.s32.totalorder %s23, 1
      %p149 = por %p147, %p148
      %p151 = scmp.ne.s32.totalorder %s136, %s150
      %p152 = scmp.eq.s32.totalorder %s23, 0
      %p153 = por %p151, %p152
      %s155 = sadd.s32 %s154, 1
      %p158 = scmp.eq.s32.totalorder %s17, 1
      %p159 = scmp.ne.s32.totalorder %s154, %s156
      %p160 = scmp.eq.s32.totalorder %s17, 0
      %p161 = por %p159, %p160
      %p162 = scmp.ne.s32.totalorder %s154, %s156
      %p163 = scmp.eq.s32.totalorder %s22, 1
      %p164 = por %p162, %p163
      %p165 = scmp.ne.s32.totalorder %s156, %s157
      %p166 = scmp.eq.s32.totalorder %s22, 0
      %p167 = por %p165, %p166
      %p168 = scmp.ne.s32.totalorder %s156, %s157
      %p169 = scmp.eq.s32.totalorder %s23, 1
      %p170 = por %p168, %p169
      %p172 = scmp.ne.s32.totalorder %s157, %s171
      %p173 = scmp.eq.s32.totalorder %s23, 0
      %p174 = por %p172, %p173
      %s176 = sadd.s32 %s175, 1
      %p179 = scmp.eq.s32.totalorder %s17, 1
      %p180 = scmp.ne.s32.totalorder %s175, %s177
      %p181 = scmp.eq.s32.totalorder %s17, 0
      %p182 = por %p180, %p181
      %p183 = scmp.ne.s32.totalorder %s175, %s177
      %p184 = scmp.eq.s32.totalorder %s22, 1
      %p185 = por %p183, %p184
      %p186 = scmp.ne.s32.totalorder %s177, %s178
      %p187 = scmp.eq.s32.totalorder %s22, 0
      %p188 = por %p186, %p187
      %p189 = scmp.ne.s32.totalorder %s177, %s178
      %p190 = scmp.eq.s32.totalorder %s23, 1
      %p191 = por %p189, %p190
      %p193 = scmp.ne.s32.totalorder %s178, %s192
      %p194 = scmp.eq.s32.totalorder %s23, 0
      %p195 = por %p193, %p194
      %s197 = sadd.s32 %s196, 1
      %p200 = scmp.eq.s32.totalorder %s17, 1
      %p201 = scmp.ne.s32.totalorder %s196, %s198
      %p202 = scmp.eq.s32.totalorder %s17, 0
      %p203 = por %p201, %p202
      %p204 = scmp.ne.s32.totalorder %s196, %s198
      %p205 = scmp.eq.s32.totalorder %s22, 1
      %p206 = por %p204, %p205
      %p207 = scmp.ne.s32.totalorder %s198, %s199
      %p208 = scmp.eq.s32.totalorder %s22, 0
      %p209 = por %p207, %p208
      %p210 = scmp.ne.s32.totalorder %s198, %s199
      %p211 = scmp.eq.s32.totalorder %s23, 1
      %p212 = por %p210, %p211
      %p214 = scmp.ne.s32.totalorder %s199, %s213
      %p215 = scmp.eq.s32.totalorder %s23, 0
      %p216 = por %p214, %p215
      %s217 = sadd.s32 %s24, %s25
      %s218 = sadd.s32 %s36, %s32
      %s219 = ssub.s32 %s217, %s218
      %p220 = scmp.eq.s32.totalorder %s219, 0
      %s222 = sadd.s32 %s221, 1
      %s223 = scalar_select %p220, %s221, %s222
      %p226 = pneg %p220
      %p227 = scmp.eq.s32.totalorder %s17, 1
      %p228 = por %p226, %p227
      %p229 = scmp.ne.s32.totalorder %s221, %s224
      %p230 = scmp.eq.s32.totalorder %s17, 0
      %p231 = por %p229, %p230
      %p232 = scmp.ne.s32.totalorder %s221, %s224
      %p233 = scmp.eq.s32.totalorder %s22, 1
      %p234 = por %p232, %p233
      %p235 = scmp.ne.s32.totalorder %s224, %s225
      %p236 = scmp.eq.s32.totalorder %s22, 0
      %p237 = por %p235, %p236
      %p238 = scmp.ne.s32.totalorder %s224, %s225
      %p239 = scmp.eq.s32.totalorder %s23, 1
      %p240 = por %p238, %p239
      %p242 = scmp.ne.s32.totalorder %s225, %s241
      %p243 = scmp.eq.s32.totalorder %s23, 0
      %p244 = por %p242, %p243
      %p245 = scmp.le.s32.totalorder 1, %s17
      %p246 = scmp.lt.s32.totalorder %s17, 3
      %p247 = pnand %p245, %p246
      %p248 = pneg %p247
      // Predicated region
      $region9: #{cross_modal_adapter.1} parent=5 // pred_check
        _
      $region10: #{cross_modal_adapter.1} parent=5 // pred_check_branch
        %250 = sbr.rel (%p247) target = $region12
      $region11: #{cross_modal_adapter.1} parent=5 // pred_region
        %s251 = ssub.s32 %s17, 1
        // Predicated region
        $region13: #{cross_modal_adapter.1} parent=11 // pred_check
          %p252 = pneg %p104
        $region14: #{cross_modal_adapter.1} parent=11 // pred_check_branch
          %254 = sbr.rel (%p252) target = $region16
        $region15: #{cross_modal_adapter.1} parent=11 // pred_region
          _
        $region16: #{cross_modal_adapter.1} parent=11 // pred_fallthru
          _
        // Predicated region
        $region17: #{cross_modal_adapter.1} parent=11 // pred_check
          %p255 = pneg %p125
        $region18: #{cross_modal_adapter.1} parent=11 // pred_check_branch
          %257 = sbr.rel (%p255) target = $region20
        $region19: #{cross_modal_adapter.1} parent=11 // pred_region
          _
        $region20: #{cross_modal_adapter.1} parent=11 // pred_fallthru
          _
        // Predicated region
        $region21: #{cross_modal_adapter.1} parent=11 // pred_check
          %p258 = pneg %p146
        $region22: #{cross_modal_adapter.1} parent=11 // pred_check_branch
          %260 = sbr.rel (%p258) target = $region24
        $region23: #{cross_modal_adapter.1} parent=11 // pred_region
          _
        $region24: #{cross_modal_adapter.1} parent=11 // pred_fallthru
          _
        // Predicated region
        $region25: #{cross_modal_adapter.1} parent=11 // pred_check
          %p261 = pneg %p167
        $region26: #{cross_modal_adapter.1} parent=11 // pred_check_branch
          %263 = sbr.rel (%p261) target = $region28
        $region27: #{cross_modal_adapter.1} parent=11 // pred_region
          _
        $region28: #{cross_modal_adapter.1} parent=11 // pred_fallthru
          _
        // Predicated region
        $region29: #{cross_modal_adapter.1} parent=11 // pred_check
          %p264 = pneg %p188
        $region30: #{cross_modal_adapter.1} parent=11 // pred_check_branch
          %266 = sbr.rel (%p264) target = $region32
        $region31: #{cross_modal_adapter.1} parent=11 // pred_region
          _
        $region32: #{cross_modal_adapter.1} parent=11 // pred_fallthru
          _
        // Predicated region
        $region33: #{cross_modal_adapter.1} parent=11 // pred_check
          %p267 = pneg %p209
        $region34: #{cross_modal_adapter.1} parent=11 // pred_check_branch
          %269 = sbr.rel (%p267) target = $region36
        $region35: #{cross_modal_adapter.1} parent=11 // pred_region
          _
        $region36: #{cross_modal_adapter.1} parent=11 // pred_fallthru
          _
      $region12: #{cross_modal_adapter.1} parent=5 // pred_fallthru
        _
      %p270 = scmp.lt.s32.totalorder %s17, 2
      // Predicated region
      $region37: #{cross_modal_adapter.1} parent=5 // pred_check
        %p271 = pneg %p270
      $region38: #{cross_modal_adapter.1} parent=5 // pred_check_branch
        %273 = sbr.rel (%p271) target = $region40
      $region39: #{cross_modal_adapter.1} parent=5 // pred_region
        // Predicated region
        $region41: #{cross_modal_adapter.1} parent=39 // pred_check
          %p274 = pneg %p51
        $region42: #{cross_modal_adapter.1} parent=39 // pred_check_branch
          %276 = sbr.rel (%p274) target = $region44
        $region43: #{cross_modal_adapter.1} parent=39 // pred_region
          %s277 = sadd.s32 %s24, %s25
          %p278 = scmp.lt.s32.totalorder %s277, 1
          %s279 = scalar_select %p278, %s277, 1
          %s280 = smul.addr %s279, 8
          %s281 = scalar_lea.vmem %s0, %s280
          %s282 = sadd.s32 %s24, %s25
        $region44: #{cross_modal_adapter.1} parent=39 // pred_fallthru
          _
        // Predicated region
        $region45: #{cross_modal_adapter.1} parent=39 // pred_check
          %p283 = pneg %p77
        $region46: #{cross_modal_adapter.1} parent=39 // pred_check_branch
          %285 = sbr.rel (%p283) target = $region48
        $region47: #{cross_modal_adapter.1} parent=39 // pred_region
          %p286 = scmp.lt.s32.totalorder %s24, 1
          %s287 = scalar_select %p286, %s24, 1
          %s288 = scalar_lea.vmem %s1, %s287
        $region48: #{cross_modal_adapter.1} parent=39 // pred_fallthru
          _
      $region40: #{cross_modal_adapter.1} parent=5 // pred_fallthru
        _
      %p289 = scmp.le.s32.totalorder 1, %s17
      %p290 = scmp.lt.s32.totalorder %s17, 3
      %p291 = pnand %p289, %p290
      %p292 = pneg %p291
      // Predicated region
      $region49: #{cross_modal_adapter.1} parent=5 // pred_check
        _
      $region50: #{cross_modal_adapter.1} parent=5 // pred_check_branch
        %294 = sbr.rel (%p291) target = $region52
      $region51: #{cross_modal_adapter.1} parent=5 // pred_region
        %s295 = ssub.s32 %s17, 1
        %s296 = sadd.s32 %s26, %s27
        %p297 = scmp.lt.s32.totalorder %s296, 1
        %s298 = scalar_select %p297, %s296, 1
        %s299 = smul.addr %s298, 8
        %s300 = scalar_lea.vmem %s0, %s299
        %p301 = pneg %p57
        %p302 = pneg %p54
        %p303 = scmp.lt.s32.totalorder %s26, 1
        %s304 = scalar_select %p303, %s26, 1
        %s305 = scalar_lea.vmem %s1, %s304
        %p306 = pneg %p83
        %p307 = pneg %p80
        %p308 = pneg %p104
        %p309 = pneg %p101
        %p310 = pneg %p125
        %p311 = pneg %p122
        %p312 = pneg %p146
        %p313 = pneg %p143
        %p314 = pneg %p167
        %p315 = pneg %p164
        %p316 = pneg %p188
        %p317 = pneg %p185
        %p318 = pneg %p209
        %p319 = pneg %p206
        %p320 = pneg %p237
        %p321 = pneg %p234
        %s322 = sand.u32 %s224, 1
        %s323 = scalar_lea.sflag [#allocation3], %s322
        %s324 = sand.u32 %s224, 1
        %s325 = smul.addr %s324, 8
        %s326 = scalar_lea.vmem [#allocation2], %s325
        %s327 = sadd.s32 %s26, %s27
        %p328 = scmp.lt.s32.totalorder %s327, 1
        %s329 = scalar_select %p328, %s327, 1
        %s330 = smul.addr %s329, 8
        %s331 = scalar_lea.vmem %s0, %s330
        %s332 = sadd.s32 %s26, %s27
        %p333 = scmp.lt.s32.totalorder %s26, 1
        %s334 = scalar_select %p333, %s26, 1
        %s335 = scalar_lea.vmem %s1, %s334
        %s336 = sadd.s32 %s26, %s27
        %v337 = vld [vmem:[%s331] sm:$0xff]
        %v338 = vld [vmem:[%s2] sm:$0xff]
        %v339 = vld [vmem:[%s2 + $0x8] sm:$0xff]
        %v340 = vld [vmem:[%s2 + $0x10] sm:$0xff]
        %v341 = vld [vmem:[%s2 + $0x18] sm:$0xff]
        %v342 = vld [vmem:[%s3] sm:$0x1]
        %v344 = vlaneseq
        %v345 = vshrl.u32 %v344, 7
        %v346 = vsub.s32 0, %v345
        %v347 = vrot.slane %v342, %v346
        %vm349 = vcmask 261120
        %v351 = vsel %vm349, %v337, 0
        %353 = vmatprep.subr.mxu0 0.0
        %354 = vmatpush1.msra.mxu0 %v338
        %355 = vmatprep.subr.mxu0 0.0
        %356 = vmatpush1.msra.mxu0 %v339
        %357 = vmatprep.subr.mxu0 0.0
        %358 = vmatpush1.msra.mxu0 %v340
        %359 = vmatprep.subr.mxu0 0.0
        %360 = vmatpush1.msra.mxu0 %v341
        %361 = vmatprep.subr.mxu0 0.0
        %362 = vmatpush1.msra.mxu0 0.0
        %363 = vmatprep.subr.mxu0 0.0
        %364 = vmatpush1.msra.mxu0 0.0
        %365 = vmatprep.subr.mxu0 0.0
        %366 = vmatpush1.msra.mxu0 0.0
        %367 = vmatprep.subr.mxu0 0.0
        %368 = vmatpush1.msra.mxu0 0.0
        %369 = vmatprep.subr.mxu0 0.0
        %370 = vmatpush1.msra.mxu0 0.0
        %371 = vmatprep.subr.mxu0 0.0
        %372 = vmatpush1.msra.mxu0 0.0
        %373 = vmatprep.subr.mxu0 0.0
        %374 = vmatpush1.msra.mxu0 0.0
        %375 = vmatprep.subr.mxu0 0.0
        %376 = vmatpush1.msra.mxu0 0.0
        %377 = vmatprep.subr.mxu0 0.0
        %378 = vmatpush1.msra.mxu0 0.0
        %379 = vmatprep.subr.mxu0 0.0
        %380 = vmatpush1.msra.mxu0 0.0
        %381 = vmatprep.subr.mxu0 0.0
        %382 = vmatpush1.msra.mxu0 0.0
        %383 = vmatprep.subr.mxu0 0.0
        %384 = vmatpush1.msra.mxu0 0.0
        %385 = vmatprep.subr.mxu0 0.0
        %386 = vmatpush1.msra.mxu0 0.0
        %387 = vmatprep.subr.mxu0 0.0
        %388 = vmatpush1.msra.mxu0 0.0
        %389 = vmatprep.subr.mxu0 0.0
        %390 = vmatpush1.msra.mxu0 0.0
        %391 = vmatprep.subr.mxu0 0.0
        %392 = vmatpush1.msra.mxu0 0.0
        %393 = vmatprep.subr.mxu0 0.0
        %394 = vmatpush1.msra.mxu0 0.0
        %395 = vmatprep.subr.mxu0 0.0
        %396 = vmatpush1.msra.mxu0 0.0
        %397 = vmatprep.subr.mxu0 0.0
        %398 = vmatpush1.msra.mxu0 0.0
        %399 = vmatprep.subr.mxu0 0.0
        %400 = vmatpush1.msra.mxu0 0.0
        %401 = vmatprep.subr.mxu0 0.0
        %402 = vmatpush1.msra.mxu0 0.0
        %403 = vmatprep.subr.mxu0 0.0
        %404 = vmatpush1.msra.mxu0 0.0
        %405 = vmatprep.subr.mxu0 0.0
        %406 = vmatpush1.msra.mxu0 0.0
        %407 = vmatprep.subr.mxu0 0.0
        %408 = vmatpush1.msra.mxu0 0.0
        %409 = vmatprep.subr.mxu0 0.0
        %410 = vmatpush1.msra.mxu0 0.0
        %411 = vmatprep.subr.mxu0 0.0
        %412 = vmatpush1.msra.mxu0 0.0
        %413 = vmatprep.subr.mxu0 0.0
        %414 = vmatpush1.msra.mxu0 0.0
        %415 = vmatprep.subr.mxu0 0.0
        %416 = vmatpush1.msra.mxu0 0.0
        %417 = vmatprep.mubr.f32.mxu0 0.0
        %418 = vmatmul.mubr.f32.gmra.mrb[0].mxu0 %v351
        %v419 = vpop.f32.mrb[0].mxu0
        %v420 = vadd.f32 %v347, %v419
        %v421 = vpop.f32.mrb[0].mxu0
        %422 = vdwg.mxu0
        %v423 = vmul.f32 %v420, 0.5
        %v424 = vmul.f32 %v420, 0.70710677
        %v425 = verf.f32.pop %v424
        %v426 = vadd.f32 %v425, 1.0
        %v427 = vmul.f32 %v423, %v426
        %v428 = vld [vmem:[%s335] sm:$0x1]
        %v430 = vlaneseq
        %v431 = vshrl.u32 %v430, 7
        %v432 = vsub.s32 0, %v431
        %v433 = vrot.slane %v428, %v432
        %v435 = vadd.f32 %v427, %v433
        %v436 = vld [vmem:[%s4] sm:$0xff]
        %v437 = vld [vmem:[%s5] sm:$0x1]
        %v439 = vlaneseq
        %v440 = vshrl.u32 %v439, 7
        %v441 = vsub.s32 0, %v440
        %v442 = vrot.slane %v437, %v441
        %vm444 = vcmask 64512
        %v446 = vsel %vm444, %v435, 0
        %448 = vmatprep.subr.mxu0 0.0
        %449 = vmatpush1.msra.mxu0 %v436
        %450 = vmatprep.subr.mxu0 0.0
        %451 = vmatpush1.msra.mxu0 0.0
        %452 = vmatprep.subr.mxu0 0.0
        %453 = vmatpush1.msra.mxu0 0.0
        %454 = vmatprep.subr.mxu0 0.0
        %455 = vmatpush1.msra.mxu0 0.0
        %456 = vmatprep.subr.mxu0 0.0
        %457 = vmatpush1.msra.mxu0 0.0
        %458 = vmatprep.subr.mxu0 0.0
        %459 = vmatpush1.msra.mxu0 0.0
        %460 = vmatprep.subr.mxu0 0.0
        %461 = vmatpush1.msra.mxu0 0.0
        %462 = vmatprep.subr.mxu0 0.0
        %463 = vmatpush1.msra.mxu0 0.0
        %464 = vmatprep.subr.mxu0 0.0
        %465 = vmatpush1.msra.mxu0 0.0
        %466 = vmatprep.subr.mxu0 0.0
        %467 = vmatpush1.msra.mxu0 0.0
        %468 = vmatprep.subr.mxu0 0.0
        %469 = vmatpush1.msra.mxu0 0.0
        %470 = vmatprep.subr.mxu0 0.0
        %471 = vmatpush1.msra.mxu0 0.0
        %472 = vmatprep.subr.mxu0 0.0
        %473 = vmatpush1.msra.mxu0 0.0
        %474 = vmatprep.subr.mxu0 0.0
        %475 = vmatpush1.msra.mxu0 0.0
        %476 = vmatprep.subr.mxu0 0.0
        %477 = vmatpush1.msra.mxu0 0.0
        %478 = vmatprep.subr.mxu0 0.0
        %479 = vmatpush1.msra.mxu0 0.0
        %480 = vmatprep.subr.mxu0 0.0
        %481 = vmatpush1.msra.mxu0 0.0
        %482 = vmatprep.subr.mxu0 0.0
        %483 = vmatpush1.msra.mxu0 0.0
        %484 = vmatprep.subr.mxu0 0.0
        %485 = vmatpush1.msra.mxu0 0.0
        %486 = vmatprep.subr.mxu0 0.0
        %487 = vmatpush1.msra.mxu0 0.0
        %488 = vmatprep.subr.mxu0 0.0
        %489 = vmatpush1.msra.mxu0 0.0
        %490 = vmatprep.subr.mxu0 0.0
        %491 = vmatpush1.msra.mxu0 0.0
        %492 = vmatprep.subr.mxu0 0.0
        %493 = vmatpush1.msra.mxu0 0.0
        %494 = vmatprep.subr.mxu0 0.0
        %495 = vmatpush1.msra.mxu0 0.0
        %496 = vmatprep.subr.mxu0 0.0
        %497 = vmatpush1.msra.mxu0 0.0
        %498 = vmatprep.subr.mxu0 0.0
        %499 = vmatpush1.msra.mxu0 0.0
        %500 = vmatprep.subr.mxu0 0.0
        %501 = vmatpush1.msra.mxu0 0.0
        %502 = vmatprep.subr.mxu0 0.0
        %503 = vmatpush1.msra.mxu0 0.0
        %504 = vmatprep.subr.mxu0 0.0
        %505 = vmatpush1.msra.mxu0 0.0
        %506 = vmatprep.subr.mxu0 0.0
        %507 = vmatpush1.msra.mxu0 0.0
        %508 = vmatprep.subr.mxu0 0.0
        %509 = vmatpush1.msra.mxu0 0.0
        %510 = vmatprep.subr.mxu0 0.0
        %511 = vmatpush1.msra.mxu0 0.0
        %512 = vmatprep.mubr.f32.mxu0 0.0
        %513 = vmatmul.mubr.f32.gmra.mrb[0].mxu0 %v446
        %v514 = vpop.f32.mrb[0].mxu0
        %v515 = vadd.f32 %v442, %v514
        %v516 = vpop.f32.mrb[0].mxu0
        %517 = vdwg.mxu0
        %v518 = vadd.f32 %v337, %v515
        %v519 = vsel %vm349, %v518, 0.0
        %520 = vadd.xlane.f32.xlu0 %v519
        %v521 = vpop.xlane.xlu0 %520
        %v522 = vrcp.pop 32.0
        %v523 = vmul.f32 %v521, %v522
        %v524 = vmul.f32 %v518, %v518
        %v525 = vsel %vm349, %v524, 0.0
        %526 = vadd.xlane.f32.xlu0 %v525
        %v527 = vpop.xlane.xlu0 %526
        %v528 = vmul.f32 %v527, %v522
        %v529 = vmul.f32 %v523, %v523
        %v530 = vsub.f32 %v528, %v529
        %v531 = vadd.f32 %v530, 1e-12
        %v532 = vrsqrt.pop %v531
        %v533 = vsub.f32 %v518, %v523
        %v534 = vmul.f32 %v533, %v532
        %v535 = vld [vmem:[%s6] sm:$0x1]
        %v537 = vlaneseq
        %v538 = vshrl.u32 %v537, 7
        %v539 = vsub.s32 0, %v538
        %v540 = vrot.slane %v535, %v539
        %v542 = vmul.f32 %v534, %v540
        %v543 = vld [vmem:[%s7] sm:$0x1]
        %v545 = vlaneseq
        %v546 = vshrl.u32 %v545, 7
        %v547 = vsub.s32 0, %v546
        %v548 = vrot.slane %v543, %v547
        %v550 = vadd.f32 %v542, %v548
        %551 = vst.msk [vmem:[%s326] sm:$0xff] %vm349, %v550
        %s552 = sand.u32 %s224, 1
        %s553 = scalar_lea.sflag [#allocation3], %s552
        %s554 = sand.u32 %s224, 1
        %s555 = smul.addr %s554, 8
        %s556 = scalar_lea.vmem [#allocation2], %s555
        // Predicated region
        $region53: #{cross_modal_adapter.1} parent=51 // pred_check
          %p557 = pneg %p234
        $region54: #{cross_modal_adapter.1} parent=51 // pred_check_branch
          %559 = sbr.rel (%p557) target = $region56
        $region55: #{cross_modal_adapter.1} parent=51 // pred_region
          %s560 = sadd.s32 %s26, %s27
          %s562 = ssub.s32 128, 128
          %563 = vsyncadd %s553, %s562
          %s564 = smul.addr %s560, 128
          %s565 = scalar_lea.hbm %s8, %s564
          %s567 = sshll.u32 %s556, 4
          %s568 = int_to_ptr.vmem [resolvable:$true] %s567
          %570 = dma.vmem_to_hbm [thread:$0]  %s568, 128, %s565, %s553
        $region56: #{cross_modal_adapter.1} parent=51 // pred_fallthru
          _
      $region52: #{cross_modal_adapter.1} parent=5 // pred_fallthru
        _
      %p571 = scmp.le.s32.totalorder 2, %s17
      // Predicated region
      $region57: #{cross_modal_adapter.1} parent=5 // pred_check
        %p572 = pneg %p571
      $region58: #{cross_modal_adapter.1} parent=5 // pred_check_branch
        %574 = sbr.rel (%p572) target = $region60
      $region59: #{cross_modal_adapter.1} parent=5 // pred_region
        %s575 = ssub.s32 %s17, 2
        // Predicated region
        $region61: #{cross_modal_adapter.1} parent=59 // pred_check
          %p576 = pneg %p240
        $region62: #{cross_modal_adapter.1} parent=59 // pred_check_branch
          %578 = sbr.rel (%p576) target = $region64
        $region63: #{cross_modal_adapter.1} parent=59 // pred_region
          %s579 = sand.u32 %s225, 1
          %s580 = scalar_lea.sflag [#allocation3], %s579
          %s581 = sand.u32 %s225, 1
          %s582 = smul.addr %s581, 8
          %s583 = scalar_lea.vmem [#allocation2], %s582
          %584 = dma.done %s580, 128
        $region64: #{cross_modal_adapter.1} parent=59 // pred_fallthru
          _
      $region60: #{cross_modal_adapter.1} parent=5 // pred_fallthru
        _
    $region6: #{cross_modal_adapter.1} parent=1 // loop_footer
      %s21 = sadd.s32 1, %s17
    $region7: #{cross_modal_adapter.1} parent=1 // loop_footer_branch
      %16 = sbr.rel target = $region3
    $region8: #{cross_modal_adapter.1} parent=1 // loop_exit
      _
    %585 = vsyncpa [#allocation3], 1
    %s586 = scalar_lea.sflag [#allocation3], 1
    %587 = vsyncpa %s586, 1

</llo_original>
